<compile_context>
chip_gen: v5e
topology: v5e:2x2
jax: 0.10.0
libtpu: 0.0.40
codegen_flags: <defaults>
</compile_context>

<pallas_src>
import numpy as np
import jax
import jax.numpy as jnp
from jax.experimental import pallas as pl
from jax.experimental.pallas import tpu as pltpu


def _copy_kernel(x_ref, o_ref):
    # Pure load/store pair: ranks match, no in-kernel reshape, no VALU/XLU work.
    o_ref[...] = x_ref[...]


def _unsqueeze_shape(shape, dim):
    """Replicates torch unsqueeze shape semantics (incl. negative dims)."""
    ndim = len(shape)
    if dim < 0:
        dim += ndim + 1
    assert 0 <= dim <= ndim, f"dim {dim} out of range for rank {ndim}"
    return shape[:dim] + (1,) + shape[dim:], dim


_LANES = 128
_MAX_COLS = 16384                 # widest lane-dense row we will form
_TARGET_BLOCK_BYTES = 4 << 20     # ~4 MiB blocks: roofline plateau on v5e/v6e/v7x
_VMEM_LIMIT_BYTES = 48 << 20      # under v7x's 64 MiB physical; ample on v5e/v6e
_TWO_CORE_BYTES = 8 << 20         # above this, force >=2 grid steps (v7x megacore)


def unsqueeze_pallas_copy(x, dim):
    """Unsqueeze that materializes the result via a lane-dense Pallas copy."""
    out_shape, _ = _unsqueeze_shape(tuple(x.shape), dim)

    if x.ndim == 0:
        return jnp.reshape(x, out_shape)

    total = int(np.prod(x.shape, dtype=np.int64))
    itemsize = np.dtype(x.dtype).itemsize

    if total % _LANES != 0:
        # Non-lane-aligned totals would force masked vst.msk partial stores and
        # unbounded (1, total) blocks.  A metadata reshape is both correct and
        # strictly faster here (per review).
        return jnp.reshape(x, out_shape)

    # --- Canonicalize to the widest lane-dense 2D slab that divides total. ---
    m_total = total // _LANES
    max_m = min(m_total, _MAX_COLS // _LANES)
    divs = [m for m in range(1, max_m + 1) if m_total % m == 0]
    wide = [m for m in divs if m_total // m >= 8]     # keep sublanes dense too
    m = max(wide) if wide else max(divs)
    cols = _LANES * m
    rows = m_total // m
    x2 = jnp.reshape(x, (rows, cols))                 # metadata-only

    # --- Block sizing: bounded blocks, ragged last block handled by Pallas. ---
    sub = 32 if itemsize < 4 else 8                   # covers f32/bf16/int8 packing
    bytes_per_row = cols * itemsize
    tr_cap = max(1, _TARGET_BLOCK_BYTES // bytes_per_row)
    tr = min(rows, max(sub, (tr_cap // sub) * sub))
    if total * itemsize > _TWO_CORE_BYTES and rows > 2 * sub:
        # Ensure >=2 grid steps so both v7x TensorCores share the copy
        # (no-op on single-TC v5e/v6e).
        tr = min(tr, max(sub, ((rows // 2) // sub) * sub))
    grid_rows = pl.cdiv(rows, tr)

    out2 = pl.pallas_call(
        _copy_kernel,
        out_shape=jax.ShapeDtypeStruct((rows, cols), x.dtype),
        grid_spec=pltpu.PrefetchScalarGridSpec(
            num_scalar_prefetch=0,
            grid=(grid_rows,),
            in_specs=[pl.BlockSpec((tr, cols), lambda i: (i, 0))],
            out_specs=pl.BlockSpec((tr, cols), lambda i: (i, 0)),
        ),
        compiler_params=pltpu.CompilerParams(
            dimension_semantics=("parallel",),
            vmem_limit_bytes=_VMEM_LIMIT_BYTES,
        ),
        input_output_aliases={0: 0},
        cost_estimate=pl.CostEstimate(
            flops=0, transcendentals=0, bytes_accessed=2 * total * itemsize),
    )(x2)

    # Metadata-only reshape to the exact unsqueezed shape.
    return jnp.reshape(out2, out_shape)


def unsqueeze(x, dim, use_kernel=False):
    """Unsqueeze.forward: handles raw arrays and dicts with an 'out' key.

    Default path is metadata-only (the review's highest-value change); set
    use_kernel=True when a materialized copy is explicitly required.
    """
    def _apply(a):
        if use_kernel:
            return unsqueeze_pallas_copy(a, dim)
        return jnp.reshape(a, _unsqueeze_shape(tuple(a.shape), dim)[0])

    if isinstance(x, dict):
        out = x.pop('out')
        x.update({'out': _apply(out)})
        return x
    return _apply(x)


if __name__ == "__main__":
    key = jax.random.PRNGKey(0)
    k1, k2 = jax.random.split(key)

    # NCHW input: batch=2, channels=4, spatial=16x16
    x = jax.random.normal(k1, (2, 4, 16, 16), dtype=jnp.float32)

    # Case 1: Pallas copy path, positive dim -> (2, 1, 4, 16, 16)
    out1 = jax.block_until_ready(unsqueeze(x, 1, use_kernel=True))
    ref1 = jnp.expand_dims(x, 1)
    assert out1.shape == ref1.shape and out1.dtype == x.dtype
    np.testing.assert_array_equal(np.asarray(out1), np.asarray(ref1))

    # Case 2: Pallas copy path, negative dim (torch semantics) -> (2, 4, 16, 16, 1)
    out2 = jax.block_until_ready(unsqueeze(x, -1, use_kernel=True))
    ref2 = jnp.expand_dims(x, -1)
    assert out2.shape == ref2.shape
    np.testing.assert_array_equal(np.asarray(out2), np.asarray(ref2))

    # Case 3: bf16 input through the kernel path (exercises packed-dtype tiling).
    xb = x.astype(jnp.bfloat16)
    out3 = jax.block_until_ready(unsqueeze(xb, 2, use_kernel=True))
    ref3 = jnp.expand_dims(xb, 2)
    assert out3.shape == ref3.shape and out3.dtype == jnp.bfloat16
    np.testing.assert_array_equal(np.asarray(out3), np.asarray(ref3))

    # Case 4: non-128-divisible total -> kernel bypass (metadata reshape).
    y = jax.random.normal(k2, (3, 5, 7), dtype=jnp.float32)
    out4 = jax.block_until_ready(unsqueeze(y, 0, use_kernel=True))
    ref4 = jnp.expand_dims(y, 0)
    assert out4.shape == ref4.shape
    np.testing.assert_array_equal(np.asarray(out4), np.asarray(ref4))

    # Case 5: default metadata-only path + dict input, mirroring the module.
    d = {'out': x, 'meta': 123}
    d_out = unsqueeze(d, 0)
    out5 = jax.block_until_ready(d_out['out'])
    ref5 = jnp.expand_dims(x, 0)
    assert d_out['meta'] == 123
    assert out5.shape == ref5.shape
    np.testing.assert_array_equal(np.asarray(out5), np.asarray(ref5))

    print("KERNEL_OK")
</pallas_src>

<mosaic_0001>
module attributes {stable_mosaic.version = 11 : i64} {
  func.func @_copy_kernel(%arg0: i32, %arg1: memref<8x256xf32, #tpu.memory_space<vmem>>, %arg2: memref<8x256xf32, #tpu.memory_space<vmem>>) attributes {dimension_semantics = [#tpu.dimension_semantics<parallel>], iteration_bounds = array<i64: 1>, scalar_prefetch = 0 : i64, scratch_operands = 0 : i64, tpu.core_type = #tpu.core_type<tc>, window_params = [{transform_indices = @transform_0, window_bounds = array<i64: 8, 256>}, {transform_indices = @transform_1, window_bounds = array<i64: 8, 256>}]} {
    %c0 = arith.constant 0 : index
    %c0_0 = arith.constant 0 : index
    %0 = vector.load %arg1[%c0, %c0_0] : memref<8x256xf32, #tpu.memory_space<vmem>>, vector<8x256xf32>
    %c0_1 = arith.constant 0 : index
    %c0_2 = arith.constant 0 : index
    %1 = vector.load %arg2[%c0_1, %c0_2] : memref<8x256xf32, #tpu.memory_space<vmem>>, vector<8x256xf32>
    tpu.vector_store %arg2[%c0_1, %c0_2], %0 {strides = array<i32>} : memref<8x256xf32, #tpu.memory_space<vmem>>, vector<8x256xf32>,
    return
  }
  func.func @transform_0(%arg0: i32) -> (i32, i32) {
    %c0_i32 = arith.constant 0 : i32
    %c0_i32_0 = arith.constant 0 : i32
    return %arg0, %c0_i32 : i32, i32
  }
  func.func @transform_1(%arg0: i32) -> (i32, i32) {
    %c0_i32 = arith.constant 0 : i32
    %c0_i32_0 = arith.constant 0 : i32
    return %arg0, %c0_i32 : i32, i32
  }
}

</mosaic_0001>

<llo_original>
// kernel: tpu_custom_call.1
$region0: #{tpu_custom_call.1}
  #allocation0 [shape = 'u32[]', space=smem, size = 0x4, offset = 0x4, fixed_abs, tag = 'smem constant byte address 0x4 - core index']
  #allocation1 [shape = 'u32[72,128]{1,0:T(1,128)}', space=vmem, size = 0x9000, scoped, tag = 'internal scratch']
  %s0 = inlined_call_operand.hbm [shape: f32[8,256], index: 0, kind: input, shape index: {}, may-alias: {0,1}]
  %s1 = inlined_call_operand.hbm [shape: f32[8,256], index: 1, kind: output, shape index: {}, may-alias: {0,1}]
  %s2 = sld [smem:[#allocation0]]
  $region18: #{tpu_custom_call.1} parent=0
    _
  %s4 = ssub.s32 1, %s2
  %s5 = scalar_select 0, %s4, %s2
  $region1: #{tpu_custom_call.1} parent=0
    #allocation2 [shape = 'u8[8192]{0}', space=vmem, size = 0x2000, scoped, tag = 'input window, operand 0, single buffered']
    #allocation3 [shape = 's32[1]{0}', space=sflag, size = 0x4, scoped, tag = 'scoped memory for tpu_custom_call.1']
    #allocation4 [shape = 's32[1]{0}', space=sflag, size = 0x4, scoped, tag = 'scoped memory for tpu_custom_call.1']
    #allocation5 [shape = 'u8[8192]{0}', space=vmem, size = 0x2000, scoped, tag = 'output window, operand 0, single buffered']
    %6 = vsyncpa [#allocation3], 0
    %7 = vsyncpa [#allocation4], 0
    // Predicated region
    $region2: #{tpu_custom_call.1} parent=1 // pred_check
      _
    $region3: #{tpu_custom_call.1} parent=1 // pred_check_branch
      %9 = sbr.rel (0) target = $region5
    $region4: #{tpu_custom_call.1} parent=1 // pred_region
      %11 = vsyncadd [#allocation3], 0
      %s13 = sshll.u32 %s0, 4
      %s14 = int_to_ptr.hbm [resolvable:$true] %s13
      %s15 = sshll.u32 [#allocation2], 4
      %s16 = int_to_ptr.vmem [resolvable:$true] %s15
      %18 = dma.hbm_to_vmem [thread:$0]  %s14, 256, %s16, [#allocation3]
    $region5: #{tpu_custom_call.1} parent=1 // pred_fallthru
      _
    // Predicated region
    $region6: #{tpu_custom_call.1} parent=1 // pred_check
      _
    $region7: #{tpu_custom_call.1} parent=1 // pred_check_branch
      %20 = sbr.rel (0) target = $region9
    $region8: #{tpu_custom_call.1} parent=1 // pred_region
      %22 = dma.done [#allocation3], 256
    $region9: #{tpu_custom_call.1} parent=1 // pred_fallthru
      _
    %v23 = vld [vmem:[#allocation2] sm:$0xff]
    %v24 = vld [vmem:[#allocation2 + $0x8] sm:$0xff]
    %25 = vst [vmem:[#allocation5] sm:$0xff] %v23
    %26 = vst [vmem:[#allocation5 + $0x8] sm:$0xff] %v24
    // Predicated region
    $region10: #{tpu_custom_call.1} parent=1 // pred_check
      _
    $region11: #{tpu_custom_call.1} parent=1 // pred_check_branch
      %28 = sbr.rel (0) target = $region13
    $region12: #{tpu_custom_call.1} parent=1 // pred_region
      %30 = vsyncadd [#allocation4], 0
      %s32 = sshll.u32 [#allocation5], 4
      %s33 = int_to_ptr.vmem [resolvable:$true] %s32
      %s34 = sshll.u32 %s1, 4
      %s35 = int_to_ptr.hbm [resolvable:$true] %s34
      %37 = dma.vmem_to_hbm [thread:$0]  %s33, 256, %s35, [#allocation4]
    $region13: #{tpu_custom_call.1} parent=1 // pred_fallthru
      _
    // Predicated region
    $region14: #{tpu_custom_call.1} parent=1 // pred_check
      _
    $region15: #{tpu_custom_call.1} parent=1 // pred_check_branch
      %39 = sbr.rel (0) target = $region17
    $region16: #{tpu_custom_call.1} parent=1 // pred_region
      %41 = dma.done [#allocation4], 256
    $region17: #{tpu_custom_call.1} parent=1 // pred_fallthru
      _
    %42 = vsyncpa [#allocation3], 1
    %43 = vsyncpa [#allocation4], 1

</llo_original>
